<compile_context>
chip_gen: v6e
topology: v6e:2x2x1
jax: 0.10.0
libtpu: 0.0.40
codegen_flags: <defaults>
</compile_context>

<pallas_src>
import functools

import jax
import jax.numpy as jnp
from jax.experimental import pallas as pl
from jax.experimental.pallas import tpu as pltpu


def _round_up(x, m):
    return ((x + m - 1) // m) * m


# ---------------------------------------------------------------------------
# Kernels
# ---------------------------------------------------------------------------
def _mm_kernel(a_ref, b_ref, o_ref):
    """Single-K-tile matmul: no reduction grid axis, no accumulator scratch."""
    o_ref[...] = jnp.dot(
        a_ref[...], b_ref[...], preferred_element_type=jnp.float32
    ).astype(o_ref.dtype)


def _mm_acc_kernel(a_ref, b_ref, o_ref, acc_ref):
    """Tiled matmul with f32 VMEM accumulator over the k grid axis."""
    @pl.when(pl.program_id(2) == 0)
    def _init():
        acc_ref[...] = jnp.zeros_like(acc_ref)

    acc_ref[...] += jnp.dot(
        a_ref[...], b_ref[...], preferred_element_type=jnp.float32
    )

    @pl.when(pl.program_id(2) == pl.num_programs(2) - 1)
    def _store():
        o_ref[...] = acc_ref[...].astype(o_ref.dtype)


# ---------------------------------------------------------------------------
# pallas_call wrappers
# ---------------------------------------------------------------------------
def _matmul_padded(a, b, *, out_dtype, tm, tn, tk):
    """(M,K)@(K,N) with M % tm == K % tk == N % tn == 0."""
    M, K = a.shape
    K2, N = b.shape
    assert K == K2, (a.shape, b.shape)
    assert M % tm == 0 and K % tk == 0 and N % tn == 0, (a.shape, b.shape, tm, tk, tn)
    gm, gn, gk = M // tm, N // tn, K // tk

    if gk == 1:
        # No reduction loop: write o_ref directly, skip the accumulator.
        return pl.pallas_call(
            _mm_kernel,
            out_shape=jax.ShapeDtypeStruct((M, N), out_dtype),
            grid_spec=pltpu.PrefetchScalarGridSpec(
                num_scalar_prefetch=0,
                grid=(gm, gn),
                in_specs=[
                    pl.BlockSpec((tm, K), lambda i, j: (i, 0)),
                    pl.BlockSpec((K, tn), lambda i, j: (0, j)),
                ],
                out_specs=pl.BlockSpec((tm, tn), lambda i, j: (i, j)),
            ),
            compiler_params=pltpu.CompilerParams(
                dimension_semantics=("parallel", "parallel"),
            ),
        )(a, b)

    return pl.pallas_call(
        _mm_acc_kernel,
        out_shape=jax.ShapeDtypeStruct((M, N), out_dtype),
        grid_spec=pltpu.PrefetchScalarGridSpec(
            num_scalar_prefetch=0,
            grid=(gm, gn, gk),
            in_specs=[
                pl.BlockSpec((tm, tk), lambda i, j, k: (i, k)),
                pl.BlockSpec((tk, tn), lambda i, j, k: (k, j)),
            ],
            out_specs=pl.BlockSpec((tm, tn), lambda i, j, k: (i, j)),
            scratch_shapes=[pltpu.VMEM((tm, tn), jnp.float32)],
        ),
        compiler_params=pltpu.CompilerParams(
            dimension_semantics=("parallel", "parallel", "arbitrary"),
        ),
    )(a, b)


def _pick_tiles(M, K, N, tm, tk, tn):
    """Clamp default tiles to the minimally (8,128)-aligned problem dims."""
    tm = min(tm, _round_up(M, 8))
    tk = min(tk, _round_up(K, 128))
    tn = min(tn, _round_up(N, 128))
    return tm, tk, tn


@functools.partial(jax.jit, static_argnames=("out_dtype", "tm", "tk", "tn"))
def pallas_matmul(a, b, *, out_dtype=None, tm=512, tk=512, tn=512):
    """General (M,K)@(K,N) with minimal per-dimension zero padding."""
    M, K = a.shape
    K2, N = b.shape
    assert K == K2, (a.shape, b.shape)
    out_dtype = a.dtype if out_dtype is None else out_dtype
    tm, tk, tn = _pick_tiles(M, K, N, tm, tk, tn)
    M_p, K_p, N_p = _round_up(M, tm), _round_up(K, tk), _round_up(N, tn)
    a_p = a if (M_p, K_p) == a.shape else jnp.pad(a, ((0, M_p - M), (0, K_p - K)))
    b_p = b if (K_p, N_p) == b.shape else jnp.pad(b, ((0, K_p - K), (0, N_p - N)))
    out_p = _matmul_padded(a_p, b_p, out_dtype=out_dtype, tm=tm, tn=tn, tk=tk)
    return out_p if (M_p, N_p) == (M, N) else out_p[:M, :N]


@functools.partial(jax.jit, static_argnames=("tm", "tk", "tn"))
def _nn4g_forward(aw_p, x, *, tm, tk, tn):
    """Forward: (adj @ W) @ X, with AW = adj @ W precomputed & pre-padded."""
    n, f = x.shape
    M_p, K_p = aw_p.shape  # already tile-aligned at init
    tn = min(tn, _round_up(f, 128))
    F_p = _round_up(f, tn)
    # Only X (the true forward input) is padded per call; zero padding is exact.
    x_p = x if (K_p, F_p) == x.shape else jnp.pad(x, ((0, K_p - n), (0, F_p - f)))
    out_p = _matmul_padded(aw_p, x_p, out_dtype=x.dtype, tm=tm, tn=tn, tk=tk)
    return out_p if (M_p, F_p) == (n, f) else out_p[:n, :f]


class NN4G:
    """JAX/Pallas port of the PyTorch NN4G module."""

    def __init__(self, adj, node_num, *, key, tm=512, tk=512, tn=512):
        assert adj.shape == (node_num, node_num)
        self.node_num = node_num
        self.adj = jnp.asarray(adj, jnp.float32)
        self.W = jax.random.normal(key, (node_num, node_num), dtype=jnp.float32)

        # adj and W are init-time constants -> precompute AW = adj @ W once
        # (same Pallas matmul), and hoist its padding out of the forward path.
        aw = pallas_matmul(self.adj, self.W, out_dtype=jnp.float32,
                           tm=tm, tk=tk, tn=tn)
        self._tm = min(tm, _round_up(node_num, 8))
        self._tk = min(tk, _round_up(node_num, 128))
        self._tn = tn
        m_p = _round_up(node_num, self._tm)
        k_p = _round_up(node_num, self._tk)
        self.AW_p = jnp.pad(aw, ((0, m_p - node_num), (0, k_p - node_num)))

    def __call__(self, X):
        assert X.shape[0] == self.node_num
        return _nn4g_forward(self.AW_p, X, tm=self._tm, tk=self._tk, tn=self._tn)


if __name__ == "__main__":
    # Shapes straight from the reference module: Node_Num=5, node_feature=10.
    NODE_NUM = 5
    NODE_FEATURE = 10

    key = jax.random.PRNGKey(0)
    k_adj, k_w, k_a, k_b = jax.random.split(key, 4)

    # Deterministic synthetic adjacency (binary, no self loops), standing in
    # for the tensor the PyTorch module receives at init.
    adj = (jax.random.uniform(k_adj, (NODE_NUM, NODE_NUM)) > 0.5).astype(jnp.float32)
    adj = adj * (1.0 - jnp.eye(NODE_NUM, dtype=jnp.float32))

    model = NN4G(adj, NODE_NUM, key=k_w)

    # Forward input: X = ones(Node_Num, node_feature), as in the reference.
    X = jnp.ones((NODE_NUM, NODE_FEATURE), dtype=jnp.float32)

    out = jax.block_until_ready(model(X))

    # Check against the original association (adj @ W) @ X.
    ref = (adj @ model.W) @ X
    assert out.shape == (NODE_NUM, NODE_FEATURE)
    assert jnp.allclose(out, ref, atol=1e-4, rtol=1e-4)

    # Also exercise the general tiled path (k-reduction grid + accumulator)
    # once, with ragged dims that require minimal per-dimension padding.
    a = jax.random.normal(k_a, (260, 700), dtype=jnp.float32)
    b = jax.random.normal(k_b, (700, 130), dtype=jnp.float32)
    big = jax.block_until_ready(pallas_matmul(a, b))
    ref_big = a @ b
    rel_err = jnp.linalg.norm(big - ref_big) / jnp.linalg.norm(ref_big)
    assert big.shape == (260, 130)
    assert rel_err < 2e-2, float(rel_err)

    print("KERNEL_OK")
</pallas_src>

<mosaic_0001>
module attributes {stable_mosaic.version = 11 : i64} {
  func.func @_mm_kernel(%arg0: i32, %arg1: i32, %arg2: memref<8x128xf32, #tpu.memory_space<vmem>>, %arg3: memref<128x128xf32, #tpu.memory_space<vmem>>, %arg4: memref<8x128xf32, #tpu.memory_space<vmem>>) attributes {dimension_semantics = [#tpu.dimension_semantics<parallel>, #tpu.dimension_semantics<parallel>], iteration_bounds = array<i64: 1, 1>, scalar_prefetch = 0 : i64, scratch_operands = 0 : i64, tpu.core_type = #tpu.core_type<tc>, window_params = [{transform_indices = @transform_0, window_bounds = array<i64: 8, 128>}, {transform_indices = @transform_1, window_bounds = array<i64: 128, 128>}, {transform_indices = @transform_2, window_bounds = array<i64: 8, 128>}]} {
    %c0 = arith.constant 0 : index
    %c0_0 = arith.constant 0 : index
    %0 = vector.load %arg2[%c0, %c0_0] : memref<8x128xf32, #tpu.memory_space<vmem>>, vector<8x128xf32>
    %c0_1 = arith.constant 0 : index
    %c0_2 = arith.constant 0 : index
    %1 = vector.load %arg3[%c0_1, %c0_2] : memref<128x128xf32, #tpu.memory_space<vmem>>, vector<128x128xf32>
    %cst = arith.constant dense<0.000000e+00> : vector<8x128xf32>
    %2 = tpu.matmul %0, %1, %cst {dimension_numbers = #tpu.dot_dimension_numbers<[1], [0], [0], [1], [0, 0, 1, 1], [], []>} : vector<8x128xf32>, vector<128x128xf32>, vector<8x128xf32> -> vector<8x128xf32>
    %c0_3 = arith.constant 0 : index
    %c0_4 = arith.constant 0 : index
    %3 = vector.load %arg4[%c0_3, %c0_4] : memref<8x128xf32, #tpu.memory_space<vmem>>, vector<8x128xf32>
    tpu.vector_store %arg4[%c0_3, %c0_4], %2 {strides = array<i32>} : memref<8x128xf32, #tpu.memory_space<vmem>>, vector<8x128xf32>,
    return
  }
  func.func @transform_0(%arg0: i32, %arg1: i32) -> (i32, i32) {
    %c0_i32 = arith.constant 0 : i32
    %c0_i32_0 = arith.constant 0 : i32
    return %arg0, %c0_i32 : i32, i32
  }
  func.func @transform_1(%arg0: i32, %arg1: i32) -> (i32, i32) {
    %c0_i32 = arith.constant 0 : i32
    %c0_i32_0 = arith.constant 0 : i32
    return %c0_i32, %arg1 : i32, i32
  }
  func.func @transform_2(%arg0: i32, %arg1: i32) -> (i32, i32) {
    %c0_i32 = arith.constant 0 : i32
    return %arg0, %arg1 : i32, i32
  }
}

</mosaic_0001>

<llo_original>
// kernel: pallas_matmul.1
$region0: #{pallas_matmul.1}
  #allocation0 [shape = 'u32[]', space=smem, size = 0x4, offset = 0x4, fixed_abs, tag = 'smem constant byte address 0x4 - core index']
  #allocation1 [shape = 'u32[144,128]{1,0:T(1,128)}', space=vmem, size = 0x12000, scoped, tag = 'internal scratch']
  %s0 = inlined_call_operand.vmem [shape: f32[8,128], index: 0, kind: input, shape index: {}]
  %s1 = inlined_call_operand.vmem [shape: f32[128,128], index: 1, kind: input, shape index: {}]
  %s2 = inlined_call_operand.hbm [shape: f32[8,128], index: 2, kind: output, shape index: {}]
  %s3 = sld [smem:[#allocation0]]
  $region18: #{pallas_matmul.1} parent=0
    _
  %s5 = ssub.s32 1, %s3
  %s6 = scalar_select 0, %s5, %s3
  $region1: #{pallas_matmul.1} parent=0
    #allocation2 [shape = 'u8[4096]{0}', space=vmem, size = 0x1000, scoped, tag = 'output window, operand 0, single buffered']
    #allocation3 [shape = 's32[1]{0}', space=sflag, size = 0x4, scoped, tag = 'scoped memory for pallas_matmul.1']
    %7 = vsyncpa [#allocation3], 0
    // Predicated region
    $region2: #{pallas_matmul.1} parent=1 // pred_check
      _
    $region3: #{pallas_matmul.1} parent=1 // pred_check_branch
      %9 = sbr.rel (0) target = $region5
    $region4: #{pallas_matmul.1} parent=1 // pred_region
      _
    $region5: #{pallas_matmul.1} parent=1 // pred_fallthru
      _
    // Predicated region
    $region6: #{pallas_matmul.1} parent=1 // pred_check
      _
    $region7: #{pallas_matmul.1} parent=1 // pred_check_branch
      %11 = sbr.rel (0) target = $region9
    $region8: #{pallas_matmul.1} parent=1 // pred_region
      _
    $region9: #{pallas_matmul.1} parent=1 // pred_fallthru
      _
    %v12 = vld [vmem:[%s0] sm:$0xff]
    %v13 = vld [vmem:[%s1] sm:$0xff]
    %v14 = vld [vmem:[%s1 + $0x8] sm:$0xff]
    %v15 = vld [vmem:[%s1 + $0x10] sm:$0xff]
    %v16 = vld [vmem:[%s1 + $0x18] sm:$0xff]
    %v17 = vld [vmem:[%s1 + $0x20] sm:$0xff]
    %v18 = vld [vmem:[%s1 + $0x28] sm:$0xff]
    %v19 = vld [vmem:[%s1 + $0x30] sm:$0xff]
    %v20 = vld [vmem:[%s1 + $0x38] sm:$0xff]
    %v21 = vld [vmem:[%s1 + $0x40] sm:$0xff]
    %v22 = vld [vmem:[%s1 + $0x48] sm:$0xff]
    %v23 = vld [vmem:[%s1 + $0x50] sm:$0xff]
    %v24 = vld [vmem:[%s1 + $0x58] sm:$0xff]
    %v25 = vld [vmem:[%s1 + $0x60] sm:$0xff]
    %v26 = vld [vmem:[%s1 + $0x68] sm:$0xff]
    %v27 = vld [vmem:[%s1 + $0x70] sm:$0xff]
    %v28 = vld [vmem:[%s1 + $0x78] sm:$0xff]
    %29 = vmatprep.subr.mxu0 0.0
    %30 = vmatpush1.msra.mxu0 %v28
    %31 = vmatprep.subr.mxu0 0.0
    %32 = vmatpush1.msra.mxu0 %v27
    %33 = vmatprep.subr.mxu0 0.0
    %34 = vmatpush1.msra.mxu0 %v26
    %35 = vmatprep.subr.mxu0 0.0
    %36 = vmatpush1.msra.mxu0 %v25
    %37 = vmatprep.subr.mxu0 0.0
    %38 = vmatpush1.msra.mxu0 %v24
    %39 = vmatprep.subr.mxu0 0.0
    %40 = vmatpush1.msra.mxu0 %v23
    %41 = vmatprep.subr.mxu0 0.0
    %42 = vmatpush1.msra.mxu0 %v22
    %43 = vmatprep.subr.mxu0 0.0
    %44 = vmatpush1.msra.mxu0 %v21
    %45 = vmatprep.subr.mxu0 0.0
    %46 = vmatpush1.msra.mxu0 %v20
    %47 = vmatprep.subr.mxu0 0.0
    %48 = vmatpush1.msra.mxu0 %v19
    %49 = vmatprep.subr.mxu0 0.0
    %50 = vmatpush1.msra.mxu0 %v18
    %51 = vmatprep.subr.mxu0 0.0
    %52 = vmatpush1.msra.mxu0 %v17
    %53 = vmatprep.subr.mxu0 0.0
    %54 = vmatpush1.msra.mxu0 %v16
    %55 = vmatprep.subr.mxu0 0.0
    %56 = vmatpush1.msra.mxu0 %v15
    %57 = vmatprep.subr.mxu0 0.0
    %58 = vmatpush1.msra.mxu0 %v14
    %59 = vmatprep.subr.mxu0 0.0
    %60 = vmatpush1.msra.mxu0 %v13
    %61 = vmatprep.subr.mxu0 0.0
    %62 = vmatpush2.msra.mxu0 0.0
    %63 = vmatprep.subr.mxu0 0.0
    %64 = vmatpush2.msra.mxu0 0.0
    %65 = vmatprep.subr.mxu0 0.0
    %66 = vmatpush2.msra.mxu0 0.0
    %67 = vmatprep.subr.mxu0 0.0
    %68 = vmatpush2.msra.mxu0 0.0
    %69 = vmatprep.subr.mxu0 0.0
    %70 = vmatpush2.msra.mxu0 0.0
    %71 = vmatprep.subr.mxu0 0.0
    %72 = vmatpush2.msra.mxu0 0.0
    %73 = vmatprep.subr.mxu0 0.0
    %74 = vmatpush2.msra.mxu0 0.0
    %75 = vmatprep.subr.mxu0 0.0
    %76 = vmatpush2.msra.mxu0 0.0
    %77 = vmatprep.subr.mxu0 0.0
    %78 = vmatpush2.msra.mxu0 0.0
    %79 = vmatprep.subr.mxu0 0.0
    %80 = vmatpush2.msra.mxu0 0.0
    %81 = vmatprep.subr.mxu0 0.0
    %82 = vmatpush2.msra.mxu0 0.0
    %83 = vmatprep.subr.mxu0 0.0
    %84 = vmatpush2.msra.mxu0 0.0
    %85 = vmatprep.subr.mxu0 0.0
    %86 = vmatpush2.msra.mxu0 0.0
    %87 = vmatprep.subr.mxu0 0.0
    %88 = vmatpush2.msra.mxu0 0.0
    %89 = vmatprep.subr.mxu0 0.0
    %90 = vmatpush2.msra.mxu0 0.0
    %91 = vmatprep.subr.mxu0 0.0
    %92 = vmatpush2.msra.mxu0 0.0
    %93 = vmatprep.mubr.f32.mxu0 0.0
    %94 = vmatmul.mubr.f32.gmra.mxu0 %v12
    %v95 = vpop.f32.mrf.mxu0
    %v96 = vadd.f32 0.0, %v95
    %v97 = vpop.f32.mrf.mxu0
    %98 = vdwg.mxu0
    %99 = vst [vmem:[#allocation2] sm:$0xff] %v96
    // Predicated region
    $region10: #{pallas_matmul.1} parent=1 // pred_check
      _
    $region11: #{pallas_matmul.1} parent=1 // pred_check_branch
      %101 = sbr.rel (0) target = $region13
    $region12: #{pallas_matmul.1} parent=1 // pred_region
      %s103 = ssub.s32 128, 128
      %104 = vsyncadd [#allocation3], %s103
      %s106 = sshll.u32 [#allocation2], 4
      %s107 = int_to_ptr.vmem [resolvable:$true] %s106
      %109 = dma.vmem_to_hbm [thread:$0]  %s107, 128, %s2, [#allocation3]
    $region13: #{pallas_matmul.1} parent=1 // pred_fallthru
      _
    // Predicated region
    $region14: #{pallas_matmul.1} parent=1 // pred_check
      _
    $region15: #{pallas_matmul.1} parent=1 // pred_check_branch
      %111 = sbr.rel (0) target = $region17
    $region16: #{pallas_matmul.1} parent=1 // pred_region
      %112 = dma.done [#allocation3], 128
    $region17: #{pallas_matmul.1} parent=1 // pred_fallthru
      _
    %113 = vsyncpa [#allocation3], 1

</llo_original>
